<compile_context>
chip_gen: v7x
topology: tpu7x:2x2x1
jax: 0.10.0
libtpu: 0.0.40
codegen_flags: <defaults>
</compile_context>

<pallas_src>
import jax
import jax.numpy as jnp
from jax.experimental import pallas as pl
from jax.experimental.pallas import tpu as pltpu


def _gcn_kernel(x_ref, wt_ref, b_ref, adj_ref, out_ref):
    # x_ref:   (Bb, N, Fin)
    # wt_ref:  (Fin, Fp)   -- pre-transposed weight, lane-padded to Fp
    # b_ref:   (1, Fp)     -- bias, zero-padded in the lane-pad region
    # adj_ref: (N, N)
    # out_ref: (Bb, N, Fp)
    Bb, N, Fin = x_ref.shape
    Fp = wt_ref.shape[1]

    # Fold Bb*N into the matmul M dimension: one (Bb*N, Fin) @ (Fin, Fp) pass
    # instead of Bb tiny ones.  This reshape only merges leading (sublane-side)
    # dims (N % 8 == 0), so no lane relayout is triggered.
    x2d = x_ref[...].reshape(Bb * N, Fin)
    support = jnp.dot(x2d, wt_ref[...], preferred_element_type=jnp.float32)
    support = (support + b_ref[...]).astype(x_ref.dtype)

    adj = adj_ref[...]
    # adj_norm @ support, one graph at a time (Bb is small and static).
    for b in range(Bb):
        s_b = support[b * N:(b + 1) * N, :]                        # (N, Fp)
        o_b = jnp.dot(adj, s_b, preferred_element_type=jnp.float32)
        o_b = jnp.maximum(o_b, 0.0)                                # ReLU
        # TODO(synk): dropout is identity here (eval mode); training-mode
        # dropout would use pltpu.prng_seed + pltpu.stateful_bernoulli masking.
        out_ref[b] = o_b.astype(out_ref.dtype)                     # lane-dense store


def _pick_block_b(B, max_bb=8):
    """Largest divisor of B <= max_bb, preferring >=2 grid steps (megacore)."""
    target = max(1, min(max_bb, B // 2)) if B > 1 else 1
    for bb in range(target, 0, -1):
        if B % bb == 0:
            return bb
    return 1


def gcn_layer(x, weight, bias, adj_norm, *, block_b=None, compute_dtype=None):
    """GCNLayer forward.

    x:        (B, N, Fin)
    weight:   (Fout, Fin)   (PyTorch nn.Linear layout)
    bias:     (Fout,)
    adj_norm: (N, N)
    returns:  (B, N, Fout)
    """
    B, N, Fin = x.shape
    Fout = weight.shape[0]
    out_dtype = x.dtype

    # Pre-transpose the weight once (free) and pad the output-feature dim to a
    # multiple of 128 lanes so the kernel's output stores are unmasked.
    Fp = Fout if Fout % 128 == 0 else ((Fout + 127) // 128) * 128
    wt = jnp.zeros((Fin, Fp), weight.dtype).at[:, :Fout].set(weight.T)
    bias2d = jnp.zeros((1, Fp), bias.dtype).at[:, :Fout].set(bias)

    if compute_dtype is not None:  # e.g. jnp.bfloat16 on v6e / v7x
        x = x.astype(compute_dtype)
        wt = wt.astype(compute_dtype)
        bias2d = bias2d.astype(compute_dtype)
        adj_norm = adj_norm.astype(compute_dtype)

    if block_b is None:
        block_b = _pick_block_b(B)
    assert B % block_b == 0, "batch must be divisible by block_b"
    grid_b = B // block_b

    isz = jnp.dtype(x.dtype).itemsize
    cost = pl.CostEstimate(
        flops=2 * B * N * Fin * Fp + 2 * B * N * N * Fp,
        transcendentals=0,
        bytes_accessed=(x.size * isz + wt.size * isz + bias2d.size * isz
                        + adj_norm.size * isz
                        + B * N * Fp * jnp.dtype(out_dtype).itemsize),
    )

    out_padded = pl.pallas_call(
        _gcn_kernel,
        out_shape=jax.ShapeDtypeStruct((B, N, Fp), out_dtype),
        grid_spec=pltpu.PrefetchScalarGridSpec(
            num_scalar_prefetch=0,
            grid=(grid_b,),
            in_specs=[
                pl.BlockSpec((block_b, N, Fin), lambda i: (i, 0, 0)),  # x
                pl.BlockSpec((Fin, Fp), lambda i: (0, 0)),             # W^T (resident)
                pl.BlockSpec((1, Fp), lambda i: (0, 0)),               # bias (resident)
                pl.BlockSpec((N, N), lambda i: (0, 0)),                # adj  (resident)
            ],
            out_specs=pl.BlockSpec((block_b, N, Fp), lambda i: (i, 0, 0)),
        ),
        compiler_params=pltpu.CompilerParams(
            dimension_semantics=("parallel",),
        ),
        cost_estimate=cost,
    )(x, wt, bias2d, adj_norm)

    return out_padded[..., :Fout] if Fp != Fout else out_padded


def normalize_adj(adj):
    """JAX glue: D^{-1/2} (A + I) D^{-1/2}, matching GCNLayer.normalize_adj."""
    n = adj.shape[0]
    a_hat = adj + jnp.eye(n, dtype=adj.dtype)
    d = a_hat.sum(axis=1)
    d_inv_sqrt = jnp.power(d, -0.5)
    return (d_inv_sqrt[:, None] * a_hat) * d_inv_sqrt[None, :]


def reference(x, weight, bias, adj_norm):
    support = jnp.einsum("bnf,of->bno", x, weight) + bias
    out = jnp.einsum("nm,bmo->bno", adj_norm, support)
    return jnp.maximum(out, 0.0)


if __name__ == "__main__":
    key = jax.random.PRNGKey(0)
    B, N, Fin, Fout = 8, 16, 32, 32

    k_x, k_w, k_b, k_a = jax.random.split(key, 4)
    x = jax.random.normal(k_x, (B, N, Fin), dtype=jnp.float32)

    # Deterministic nn.Linear-style init: U(-1/sqrt(Fin), 1/sqrt(Fin))
    bound = 1.0 / (Fin ** 0.5)
    weight = jax.random.uniform(k_w, (Fout, Fin), jnp.float32, -bound, bound)
    bias = jax.random.uniform(k_b, (Fout,), jnp.float32, -bound, bound)

    # Symmetric 0/1 adjacency (no self loops), then GCN normalization.
    a_rand = jax.random.uniform(k_a, (N, N), jnp.float32)
    adj = (a_rand + a_rand.T > 1.0).astype(jnp.float32)
    adj = adj * (1.0 - jnp.eye(N, dtype=jnp.float32))
    adj_norm = normalize_adj(adj)

    out = gcn_layer(x, weight, bias, adj_norm)
    out = jax.block_until_ready(out)

    ref = reference(x, weight, bias, adj_norm)
    assert out.shape == (B, N, Fout)
    assert jnp.allclose(out, ref, atol=1e-5, rtol=1e-5), "mismatch vs reference"

    print("KERNEL_OK")
</pallas_src>

<mosaic_0001>
module attributes {stable_mosaic.version = 11 : i64} {
  func.func @_gcn_kernel(%arg0: i32, %arg1: memref<4x16x32xf32, #tpu.memory_space<vmem>>, %arg2: memref<32x128xf32, #tpu.memory_space<vmem>>, %arg3: memref<1x128xf32, #tpu.memory_space<vmem>>, %arg4: memref<16x16xf32, #tpu.memory_space<vmem>>, %arg5: memref<4x16x128xf32, #tpu.memory_space<vmem>>) attributes {dimension_semantics = [#tpu.dimension_semantics<parallel>], iteration_bounds = array<i64: 2>, scalar_prefetch = 0 : i64, scratch_operands = 0 : i64, tpu.core_type = #tpu.core_type<tc>, window_params = [{transform_indices = @transform_0, window_bounds = array<i64: 4, 16, 32>}, {pipeline_mode = #tpu.pipeline_mode<synchronous>, transform_indices = @transform_1, window_bounds = array<i64: 32, 128>}, {pipeline_mode = #tpu.pipeline_mode<synchronous>, transform_indices = @transform_2, window_bounds = array<i64: 1, 128>}, {pipeline_mode = #tpu.pipeline_mode<synchronous>, transform_indices = @transform_3, window_bounds = array<i64: 16, 16>}, {transform_indices = @transform_4, window_bounds = array<i64: 4, 16, 128>}]} {
    %c0 = arith.constant 0 : index
    %c0_0 = arith.constant 0 : index
    %c0_1 = arith.constant 0 : index
    %0 = vector.load %arg1[%c0, %c0_0, %c0_1] : memref<4x16x32xf32, #tpu.memory_space<vmem>>, vector<4x16x32xf32>
    %1 = vector.shape_cast %0 : vector<4x16x32xf32> to vector<64x32xf32>
    %c0_2 = arith.constant 0 : index
    %c0_3 = arith.constant 0 : index
    %2 = vector.load %arg2[%c0_2, %c0_3] : memref<32x128xf32, #tpu.memory_space<vmem>>, vector<32x128xf32>
    %cst = arith.constant dense<0.000000e+00> : vector<64x128xf32>
    %3 = tpu.matmul %1, %2, %cst {dimension_numbers = #tpu.dot_dimension_numbers<[1], [0], [0], [1], [0, 0, 1, 1], [], []>} : vector<64x32xf32>, vector<32x128xf32>, vector<64x128xf32> -> vector<64x128xf32>
    %c0_4 = arith.constant 0 : index
    %c0_5 = arith.constant 0 : index
    %4 = vector.load %arg3[%c0_4, %c0_5] : memref<1x128xf32, #tpu.memory_space<vmem>>, vector<1x128xf32>
    %5 = vector.broadcast %4 : vector<1x128xf32> to vector<64x128xf32>
    %6 = arith.addf %3, %5 : vector<64x128xf32>
    %c0_6 = arith.constant 0 : index
    %c0_7 = arith.constant 0 : index
    %7 = vector.load %arg4[%c0_6, %c0_7] : memref<16x16xf32, #tpu.memory_space<vmem>>, vector<16x16xf32>
    %8 = vector.extract_strided_slice %6 {offsets = [0, 0], sizes = [16, 128], strides = [1, 1]} : vector<64x128xf32> to vector<16x128xf32>
    %cst_8 = arith.constant dense<0.000000e+00> : vector<16x128xf32>
    %9 = tpu.matmul %7, %8, %cst_8 {dimension_numbers = #tpu.dot_dimension_numbers<[1], [0], [0], [1], [0, 0, 1, 1], [], []>} : vector<16x16xf32>, vector<16x128xf32>, vector<16x128xf32> -> vector<16x128xf32>
    %cst_9 = arith.constant 0.000000e+00 : f32
    %10 = vector.broadcast %cst_9 : f32 to vector<16x128xf32>
    %11 = arith.maximumf %9, %10 : vector<16x128xf32>
    %c0_10 = arith.constant 0 : index
    %c0_11 = arith.constant 0 : index
    %c0_12 = arith.constant 0 : index
    %12 = vector.load %arg5[%c0_10, %c0_11, %c0_12] : memref<4x16x128xf32, #tpu.memory_space<vmem>>, vector<1x16x128xf32>
    %13 = vector.shape_cast %12 : vector<1x16x128xf32> to vector<16x128xf32>
    %14 = vector.shape_cast %11 : vector<16x128xf32> to vector<1x16x128xf32>
    tpu.vector_store %arg5[%c0_10, %c0_11, %c0_12], %14 {strides = array<i32>} : memref<4x16x128xf32, #tpu.memory_space<vmem>>, vector<1x16x128xf32>,
    %15 = vector.extract_strided_slice %6 {offsets = [16, 0], sizes = [16, 128], strides = [1, 1]} : vector<64x128xf32> to vector<16x128xf32>
    %cst_13 = arith.constant dense<0.000000e+00> : vector<16x128xf32>
    %16 = tpu.matmul %7, %15, %cst_13 {dimension_numbers = #tpu.dot_dimension_numbers<[1], [0], [0], [1], [0, 0, 1, 1], [], []>} : vector<16x16xf32>, vector<16x128xf32>, vector<16x128xf32> -> vector<16x128xf32>
    %cst_14 = arith.constant 0.000000e+00 : f32
    %17 = vector.broadcast %cst_14 : f32 to vector<16x128xf32>
    %18 = arith.maximumf %16, %17 : vector<16x128xf32>
    %c1 = arith.constant 1 : index
    %c0_15 = arith.constant 0 : index
    %c0_16 = arith.constant 0 : index
    %19 = vector.load %arg5[%c1, %c0_15, %c0_16] : memref<4x16x128xf32, #tpu.memory_space<vmem>>, vector<1x16x128xf32>
    %20 = vector.shape_cast %19 : vector<1x16x128xf32> to vector<16x128xf32>
    %21 = vector.shape_cast %18 : vector<16x128xf32> to vector<1x16x128xf32>
    tpu.vector_store %arg5[%c1, %c0_15, %c0_16], %21 {strides = array<i32>} : memref<4x16x128xf32, #tpu.memory_space<vmem>>, vector<1x16x128xf32>,
    %22 = vector.extract_strided_slice %6 {offsets = [32, 0], sizes = [16, 128], strides = [1, 1]} : vector<64x128xf32> to vector<16x128xf32>
    %cst_17 = arith.constant dense<0.000000e+00> : vector<16x128xf32>
    %23 = tpu.matmul %7, %22, %cst_17 {dimension_numbers = #tpu.dot_dimension_numbers<[1], [0], [0], [1], [0, 0, 1, 1], [], []>} : vector<16x16xf32>, vector<16x128xf32>, vector<16x128xf32> -> vector<16x128xf32>
    %cst_18 = arith.constant 0.000000e+00 : f32
    %24 = vector.broadcast %cst_18 : f32 to vector<16x128xf32>
    %25 = arith.maximumf %23, %24 : vector<16x128xf32>
    %c2 = arith.constant 2 : index
    %c0_19 = arith.constant 0 : index
    %c0_20 = arith.constant 0 : index
    %26 = vector.load %arg5[%c2, %c0_19, %c0_20] : memref<4x16x128xf32, #tpu.memory_space<vmem>>, vector<1x16x128xf32>
    %27 = vector.shape_cast %26 : vector<1x16x128xf32> to vector<16x128xf32>
    %28 = vector.shape_cast %25 : vector<16x128xf32> to vector<1x16x128xf32>
    tpu.vector_store %arg5[%c2, %c0_19, %c0_20], %28 {strides = array<i32>} : memref<4x16x128xf32, #tpu.memory_space<vmem>>, vector<1x16x128xf32>,
    %29 = vector.extract_strided_slice %6 {offsets = [48, 0], sizes = [16, 128], strides = [1, 1]} : vector<64x128xf32> to vector<16x128xf32>
    %cst_21 = arith.constant dense<0.000000e+00> : vector<16x128xf32>
    %30 = tpu.matmul %7, %29, %cst_21 {dimension_numbers = #tpu.dot_dimension_numbers<[1], [0], [0], [1], [0, 0, 1, 1], [], []>} : vector<16x16xf32>, vector<16x128xf32>, vector<16x128xf32> -> vector<16x128xf32>
    %cst_22 = arith.constant 0.000000e+00 : f32
    %31 = vector.broadcast %cst_22 : f32 to vector<16x128xf32>
    %32 = arith.maximumf %30, %31 : vector<16x128xf32>
    %c3 = arith.constant 3 : index
    %c0_23 = arith.constant 0 : index
    %c0_24 = arith.constant 0 : index
    %33 = vector.load %arg5[%c3, %c0_23, %c0_24] : memref<4x16x128xf32, #tpu.memory_space<vmem>>, vector<1x16x128xf32>
    %34 = vector.shape_cast %33 : vector<1x16x128xf32> to vector<16x128xf32>
    %35 = vector.shape_cast %32 : vector<16x128xf32> to vector<1x16x128xf32>
    tpu.vector_store %arg5[%c3, %c0_23, %c0_24], %35 {strides = array<i32>} : memref<4x16x128xf32, #tpu.memory_space<vmem>>, vector<1x16x128xf32>,
    return
  }
  func.func @transform_0(%arg0: i32) -> (i32, i32, i32) {
    %c0_i32 = arith.constant 0 : i32
    %c0_i32_0 = arith.constant 0 : i32
    %c0_i32_1 = arith.constant 0 : i32
    return %arg0, %c0_i32, %c0_i32_0 : i32, i32, i32
  }
  func.func @transform_1(%arg0: i32) -> (i32, i32) {
    %c0_i32 = arith.constant 0 : i32
    %c0_i32_0 = arith.constant 0 : i32
    %c0_i32_1 = arith.constant 0 : i32
    return %c0_i32, %c0_i32_0 : i32, i32
  }
  func.func @transform_2(%arg0: i32) -> (i32, i32) {
    %c0_i32 = arith.constant 0 : i32
    %c0_i32_0 = arith.constant 0 : i32
    %c0_i32_1 = arith.constant 0 : i32
    return %c0_i32, %c0_i32_0 : i32, i32
  }
  func.func @transform_3(%arg0: i32) -> (i32, i32) {
    %c0_i32 = arith.constant 0 : i32
    %c0_i32_0 = arith.constant 0 : i32
    %c0_i32_1 = arith.constant 0 : i32
    return %c0_i32, %c0_i32_0 : i32, i32
  }
  func.func @transform_4(%arg0: i32) -> (i32, i32, i32) {
    %c0_i32 = arith.constant 0 : i32
    %c0_i32_0 = arith.constant 0 : i32
    %c0_i32_1 = arith.constant 0 : i32
    return %arg0, %c0_i32, %c0_i32_0 : i32, i32, i32
  }
}

</mosaic_0001>

<llo_original>
// kernel: tpu_custom_call.1
$region0: #{tpu_custom_call.1}
  #allocation0 [shape = 'u32[]', space=smem, size = 0x4, offset = 0x4, fixed_abs, tag = 'smem constant byte address 0x4 - core index']
  #allocation1 [shape = 'u32[144,128]{1,0:T(1,128)}', space=vmem, size = 0x12000, scoped, tag = 'internal scratch']
  %s0 = inlined_call_operand.hbm [shape: f32[8,16,32], index: 0, kind: input, shape index: {}]
  %s1 = inlined_call_operand.hbm [shape: f32[32,128], index: 1, kind: input, shape index: {}]
  %s2 = inlined_call_operand.vmem [shape: f32[1,128], index: 2, kind: input, shape index: {}]
  %s3 = inlined_call_operand.hbm [shape: f32[16,16], index: 3, kind: input, shape index: {}]
  %s4 = inlined_call_operand.hbm [shape: f32[8,16,128], index: 4, kind: output, shape index: {}]
  %s5 = sld [smem:[#allocation0]]
  $region61: #{tpu_custom_call.1} parent=0
    _
  %s7 = ssub.s32 1, %s5
  %s8 = scalar_select 0, %s7, %s5
  $region1: #{tpu_custom_call.1} parent=0
    #allocation2 [shape = 'u8[65536]{0}', space=vmem, size = 0x10000, scoped, tag = 'input window, operand 0']
    #allocation3 [shape = 's32[2]{0}', space=sflag, size = 0x8, scoped, tag = 'scoped memory for tpu_custom_call.1']
    #allocation4 [shape = 's32[2]{0}', space=sflag, size = 0x8, scoped, tag = 'scoped memory for tpu_custom_call.1']
    #allocation5 [shape = 'u8[16384]{0}', space=vmem, size = 0x4000, scoped, tag = 'input window, operand 1, single buffered']
    #allocation6 [shape = 's32[1]{0}', space=sflag, size = 0x4, scoped, tag = 'scoped memory for tpu_custom_call.1']
    #allocation7 [shape = 'u8[8192]{0}', space=vmem, size = 0x2000, scoped, tag = 'input window, operand 3, single buffered']
    #allocation8 [shape = 'u8[65536]{0}', space=vmem, size = 0x10000, scoped, tag = 'output window, operand 0']
    %9 = vsyncpa [#allocation3], 0
    %s10 = scalar_lea.sflag [#allocation3], 1
    %11 = vsyncpa %s10, 0
    %12 = vsyncpa [#allocation6], 0
    %13 = vsyncpa [#allocation4], 0
    %s14 = scalar_lea.sflag [#allocation4], 1
    %15 = vsyncpa %s14, 0
    loop: start=0, step=1, limit=4
    $region2: #{tpu_custom_call.1} parent=1 // loop_pre_header
      _
    $region3: #{tpu_custom_call.1} parent=1 // loop_header
      %s17 = sphi 0, %s21
      %p18 = scmp.ge.s32.totalorder %s17, 4
      %s27 = sphi 0, %s29
      %s30 = sphi 0, %s27
      %s31 = sphi 0, %s30
      %s47 = sphi 0, %s31
      %s51 = sphi 0, %s51
      %s53 = sphi 0, %s51
      %s54 = sphi 0, %s53
      %s68 = sphi 0, %s54
      %s72 = sphi 0, %s72
      %s74 = sphi 0, %s72
      %s75 = sphi 0, %s74
      %s89 = sphi 0, %s75
      %s93 = sphi 0, %s93
      %s95 = sphi 0, %s93
      %s96 = sphi 0, %s95
      %s110 = sphi 0, %s96
      %s116 = sphi 0, %s118
      %s119 = sphi 0, %s116
      %s120 = sphi 0, %s119
      %s136 = sphi 0, %s120
    $region4: #{tpu_custom_call.1} parent=1 // loop_header_branch
      %20 = sbr.rel (%p18) target = $region8
    $region5: #{tpu_custom_call.1} parent=1 // loop_body
      %s22 = ssub.s32 %s17, 1
      %s23 = ssub.s32 %s17, 2
      %s24 = sadd.s32 %s17, 1
      %s25 = ssub.s32 %s17, %s24
      %p26 = scmp.eq.s32.totalorder %s25, 0
      %s28 = sadd.s32 %s27, 1
      %s29 = scalar_select %p26, %s27, %s28
      %p32 = pneg %p26
      %p33 = scmp.eq.s32.totalorder %s17, 1
      %p34 = por %p32, %p33
      %p35 = scmp.ne.s32.totalorder %s27, %s30
      %p36 = scmp.eq.s32.totalorder %s17, 0
      %p37 = por %p35, %p36
      %p38 = scmp.ne.s32.totalorder %s27, %s30
      %p39 = scmp.eq.s32.totalorder %s22, 1
      %p40 = por %p38, %p39
      %p41 = scmp.ne.s32.totalorder %s30, %s31
      %p42 = scmp.eq.s32.totalorder %s22, 0
      %p43 = por %p41, %p42
      %p44 = scmp.ne.s32.totalorder %s30, %s31
      %p45 = scmp.eq.s32.totalorder %s23, 1
      %p46 = por %p44, %p45
      %p48 = scmp.ne.s32.totalorder %s31, %s47
      %p49 = scmp.eq.s32.totalorder %s23, 0
      %p50 = por %p48, %p49
      %s52 = sadd.s32 %s51, 1
      %p55 = scmp.eq.s32.totalorder %s17, 1
      %p56 = scmp.ne.s32.totalorder %s51, %s53
      %p57 = scmp.eq.s32.totalorder %s17, 0
      %p58 = por %p56, %p57
      %p59 = scmp.ne.s32.totalorder %s51, %s53
      %p60 = scmp.eq.s32.totalorder %s22, 1
      %p61 = por %p59, %p60
      %p62 = scmp.ne.s32.totalorder %s53, %s54
      %p63 = scmp.eq.s32.totalorder %s22, 0
      %p64 = por %p62, %p63
      %p65 = scmp.ne.s32.totalorder %s53, %s54
      %p66 = scmp.eq.s32.totalorder %s23, 1
      %p67 = por %p65, %p66
      %p69 = scmp.ne.s32.totalorder %s54, %s68
      %p70 = scmp.eq.s32.totalorder %s23, 0
      %p71 = por %p69, %p70
      %s73 = sadd.s32 %s72, 1
      %p76 = scmp.eq.s32.totalorder %s17, 1
      %p77 = scmp.ne.s32.totalorder %s72, %s74
      %p78 = scmp.eq.s32.totalorder %s17, 0
      %p79 = por %p77, %p78
      %p80 = scmp.ne.s32.totalorder %s72, %s74
      %p81 = scmp.eq.s32.totalorder %s22, 1
      %p82 = por %p80, %p81
      %p83 = scmp.ne.s32.totalorder %s74, %s75
      %p84 = scmp.eq.s32.totalorder %s22, 0
      %p85 = por %p83, %p84
      %p86 = scmp.ne.s32.totalorder %s74, %s75
      %p87 = scmp.eq.s32.totalorder %s23, 1
      %p88 = por %p86, %p87
      %p90 = scmp.ne.s32.totalorder %s75, %s89
      %p91 = scmp.eq.s32.totalorder %s23, 0
      %p92 = por %p90, %p91
      %s94 = sadd.s32 %s93, 1
      %p97 = scmp.eq.s32.totalorder %s17, 1
      %p98 = scmp.ne.s32.totalorder %s93, %s95
      %p99 = scmp.eq.s32.totalorder %s17, 0
      %p100 = por %p98, %p99
      %p101 = scmp.ne.s32.totalorder %s93, %s95
      %p102 = scmp.eq.s32.totalorder %s22, 1
      %p103 = por %p101, %p102
      %p104 = scmp.ne.s32.totalorder %s95, %s96
      %p105 = scmp.eq.s32.totalorder %s22, 0
      %p106 = por %p104, %p105
      %p107 = scmp.ne.s32.totalorder %s95, %s96
      %p108 = scmp.eq.s32.totalorder %s23, 1
      %p109 = por %p107, %p108
      %p111 = scmp.ne.s32.totalorder %s96, %s110
      %p112 = scmp.eq.s32.totalorder %s23, 0
      %p113 = por %p111, %p112
      %s114 = ssub.s32 %s17, %s24
      %p115 = scmp.eq.s32.totalorder %s114, 0
      %s117 = sadd.s32 %s116, 1
      %s118 = scalar_select %p115, %s116, %s117
      %p121 = pneg %p115
      %p122 = scmp.eq.s32.totalorder %s17, 1
      %p123 = por %p121, %p122
      %p124 = scmp.ne.s32.totalorder %s116, %s119
      %p125 = scmp.eq.s32.totalorder %s17, 0
      %p126 = por %p124, %p125
      %p127 = scmp.ne.s32.totalorder %s116, %s119
      %p128 = scmp.eq.s32.totalorder %s22, 1
      %p129 = por %p127, %p128
      %p130 = scmp.ne.s32.totalorder %s119, %s120
      %p131 = scmp.eq.s32.totalorder %s22, 0
      %p132 = por %p130, %p131
      %p133 = scmp.ne.s32.totalorder %s119, %s120
      %p134 = scmp.eq.s32.totalorder %s23, 1
      %p135 = por %p133, %p134
      %p137 = scmp.ne.s32.totalorder %s120, %s136
      %p138 = scmp.eq.s32.totalorder %s23, 0
      %p139 = por %p137, %p138
      %p140 = scmp.le.s32.totalorder 1, %s17
      %p141 = scmp.lt.s32.totalorder %s17, 3
      %p142 = pnand %p140, %p141
      %p143 = pneg %p142
      // Predicated region
      $region9: #{tpu_custom_call.1} parent=5 // pred_check
        _
      $region10: #{tpu_custom_call.1} parent=5 // pred_check_branch
        %145 = sbr.rel (%p142) target = $region12
      $region11: #{tpu_custom_call.1} parent=5 // pred_region
        %s146 = ssub.s32 %s17, 1
        // Predicated region
        $region13: #{tpu_custom_call.1} parent=11 // pred_check
          %p147 = pneg %p64
        $region14: #{tpu_custom_call.1} parent=11 // pred_check_branch
          %149 = sbr.rel (%p147) target = $region16
        $region15: #{tpu_custom_call.1} parent=11 // pred_region
          %s151 = ssub.s32 512, 512
          %152 = vsyncadd [#allocation6], %s151
          %s153 = sshll.u32 [#allocation5], 4
          %s154 = int_to_ptr.vmem [resolvable:$true] %s153
          %159 = dma.hbm_to_vmem [thread:$0]  %s1, 512, %s154, [#allocation6], 128, 128, 8
        $region16: #{tpu_custom_call.1} parent=11 // pred_fallthru
          _
        // Predicated region
        $region17: #{tpu_custom_call.1} parent=11 // pred_check
          %p160 = pneg %p85
        $region18: #{tpu_custom_call.1} parent=11 // pred_check_branch
          %162 = sbr.rel (%p160) target = $region20
        $region19: #{tpu_custom_call.1} parent=11 // pred_region
          _
        $region20: #{tpu_custom_call.1} parent=11 // pred_fallthru
          _
        // Predicated region
        $region21: #{tpu_custom_call.1} parent=11 // pred_check
          %p163 = pneg %p106
        $region22: #{tpu_custom_call.1} parent=11 // pred_check_branch
          %165 = sbr.rel (%p163) target = $region24
        $region23: #{tpu_custom_call.1} parent=11 // pred_region
          %s167 = ssub.s32 256, 256
          %168 = vsyncadd [#allocation6], %s167
          %s169 = sshll.u32 [#allocation7], 4
          %s170 = int_to_ptr.vmem [resolvable:$true] %s169
          %175 = dma.hbm_to_vmem [thread:$0]  %s3, 256, %s170, [#allocation6], 128, 128, 8
        $region24: #{tpu_custom_call.1} parent=11 // pred_fallthru
          _
      $region12: #{tpu_custom_call.1} parent=5 // pred_fallthru
        _
      %p176 = scmp.lt.s32.totalorder %s17, 2
      // Predicated region
      $region25: #{tpu_custom_call.1} parent=5 // pred_check
        %p177 = pneg %p176
      $region26: #{tpu_custom_call.1} parent=5 // pred_check_branch
        %179 = sbr.rel (%p177) target = $region28
      $region27: #{tpu_custom_call.1} parent=5 // pred_region
        // Predicated region
        $region29: #{tpu_custom_call.1} parent=27 // pred_check
          %p180 = pneg %p37
        $region30: #{tpu_custom_call.1} parent=27 // pred_check_branch
          %182 = sbr.rel (%p180) target = $region32
        $region31: #{tpu_custom_call.1} parent=27 // pred_region
          %s183 = sand.u32 %s27, 1
          %s184 = scalar_lea.sflag [#allocation3], %s183
          %s185 = sand.u32 %s27, 1
          %s186 = smul.addr %s185, 64
          %s187 = scalar_lea.vmem [#allocation2], %s186
          %s188 = smul.u32 4, %s17
          %s190 = ssub.s32 1024, 1024
          %191 = vsyncadd %s184, %s190
          %s192 = smul.addr %s188, 2
          %s193 = smul.addr %s192, 128
          %s194 = scalar_lea.hbm %s0, %s193
          %s195 = sshll.u32 %s187, 4
          %s196 = int_to_ptr.vmem [resolvable:$true] %s195
          %201 = dma.hbm_to_vmem [thread:$0]  %s194, 1024, %s196, %s184, 128, 128, 8
        $region32: #{tpu_custom_call.1} parent=27 // pred_fallthru
          _
      $region28: #{tpu_custom_call.1} parent=5 // pred_fallthru
        _
      %p202 = scmp.le.s32.totalorder 1, %s17
      %p203 = scmp.lt.s32.totalorder %s17, 3
      %p204 = pnand %p202, %p203
      %p205 = pneg %p204
      // Predicated region
      $region33: #{tpu_custom_call.1} parent=5 // pred_check
        _
      $region34: #{tpu_custom_call.1} parent=5 // pred_check_branch
        %207 = sbr.rel (%p204) target = $region36
      $region35: #{tpu_custom_call.1} parent=5 // pred_region
        %s208 = ssub.s32 %s17, 1
        %s209 = sand.u32 %s30, 1
        %s210 = scalar_lea.sflag [#allocation3], %s209
        %s211 = sand.u32 %s30, 1
        %s212 = smul.addr %s211, 64
        %s213 = scalar_lea.vmem [#allocation2], %s212
        // Predicated region
        $region37: #{tpu_custom_call.1} parent=35 // pred_check
          %p214 = pneg %p43
        $region38: #{tpu_custom_call.1} parent=35 // pred_check_branch
          %216 = sbr.rel (%p214) target = $region40
        $region39: #{tpu_custom_call.1} parent=35 // pred_region
          %217 = dma.done %s210, 1024
        $region40: #{tpu_custom_call.1} parent=35 // pred_fallthru
          _
        // Predicated region
        $region41: #{tpu_custom_call.1} parent=35 // pred_check
          %p218 = pneg %p64
        $region42: #{tpu_custom_call.1} parent=35 // pred_check_branch
          %220 = sbr.rel (%p218) target = $region44
        $region43: #{tpu_custom_call.1} parent=35 // pred_region
          %221 = dma.done [#allocation6], 512
        $region44: #{tpu_custom_call.1} parent=35 // pred_fallthru
          _
        // Predicated region
        $region45: #{tpu_custom_call.1} parent=35 // pred_check
          %p222 = pneg %p106
        $region46: #{tpu_custom_call.1} parent=35 // pred_check_branch
          %224 = sbr.rel (%p222) target = $region48
        $region47: #{tpu_custom_call.1} parent=35 // pred_region
          %225 = dma.done [#allocation6], 256
        $region48: #{tpu_custom_call.1} parent=35 // pred_fallthru
          _
        %s226 = sand.u32 %s30, 1
        %s227 = scalar_lea.sflag [#allocation3], %s226
        %s228 = sand.u32 %s30, 1
        %s229 = smul.addr %s228, 64
        %s230 = scalar_lea.vmem [#allocation2], %s229
        %p231 = pneg %p43
        %p232 = pneg %p40
        %p233 = pneg %p64
        %p234 = pneg %p61
        %p235 = pneg %p85
        %p236 = pneg %p82
        %p237 = pneg %p106
        %p238 = pneg %p103
        %p239 = pneg %p132
        %p240 = pneg %p129
        %s241 = sand.u32 %s119, 1
        %s242 = scalar_lea.sflag [#allocation4], %s241
        %s243 = sand.u32 %s119, 1
        %s244 = smul.addr %s243, 64
        %s245 = scalar_lea.vmem [#allocation8], %s244
        %s246 = smul.u32 4, %s22
        %s247 = smul.u32 4, %s22
        %v248 = vld [vmem:[%s213] sm:$0xff]
        %v249 = vld [vmem:[%s213 + $0x8] sm:$0xff]
        %v250 = vld [vmem:[%s213 + $0x10] sm:$0xff]
        %v251 = vld [vmem:[%s213 + $0x18] sm:$0xff]
        %v252 = vld [vmem:[%s213 + $0x20] sm:$0xff]
        %v253 = vld [vmem:[%s213 + $0x28] sm:$0xff]
        %v254 = vld [vmem:[%s213 + $0x30] sm:$0xff]
        %v255 = vld [vmem:[%s213 + $0x38] sm:$0xff]
        %v256 = vld [vmem:[#allocation5] sm:$0xff]
        %v257 = vld [vmem:[#allocation5 + $0x8] sm:$0xff]
        %v258 = vld [vmem:[#allocation5 + $0x10] sm:$0xff]
        %v259 = vld [vmem:[#allocation5 + $0x18] sm:$0xff]
        %v260 = vld [vmem:[%s2] sm:$0x1]
        %v262 = vlaneseq
        %v263 = vshrl.u32 %v262, 7
        %v264 = vsub.s32 0, %v263
        %v265 = vrot.slane %v260, %v264
        %vm267 = vcmask 261120
        %v269 = vsel %vm267, %v248, 0
        %v272 = vsel %vm267, %v249, 0
        %v275 = vsel %vm267, %v250, 0
        %v278 = vsel %vm267, %v251, 0
        %v281 = vsel %vm267, %v252, 0
        %v284 = vsel %vm267, %v253, 0
        %v287 = vsel %vm267, %v254, 0
        %v290 = vsel %vm267, %v255, 0
        %292 = vmatprep.subr.mxu0 0.0
        %293 = vmatpush1.msra.mxu0 %v256
        %294 = vmatprep.subr.mxu0 0.0
        %295 = vmatpush1.msra.mxu0 %v257
        %296 = vmatprep.subr.mxu0 0.0
        %297 = vmatpush1.msra.mxu0 %v258
        %298 = vmatprep.subr.mxu0 0.0
        %299 = vmatpush1.msra.mxu0 %v259
        %300 = vmatprep.subr.mxu0 0.0
        %301 = vmatpush1.msra.mxu0 0.0
        %302 = vmatprep.subr.mxu0 0.0
        %303 = vmatpush1.msra.mxu0 0.0
        %304 = vmatprep.subr.mxu0 0.0
        %305 = vmatpush1.msra.mxu0 0.0
        %306 = vmatprep.subr.mxu0 0.0
        %307 = vmatpush1.msra.mxu0 0.0
        %308 = vmatprep.subr.mxu0 0.0
        %309 = vmatpush1.msra.mxu0 0.0
        %310 = vmatprep.subr.mxu0 0.0
        %311 = vmatpush1.msra.mxu0 0.0
        %312 = vmatprep.subr.mxu0 0.0
        %313 = vmatpush1.msra.mxu0 0.0
        %314 = vmatprep.subr.mxu0 0.0
        %315 = vmatpush1.msra.mxu0 0.0
        %316 = vmatprep.subr.mxu0 0.0
        %317 = vmatpush1.msra.mxu0 0.0
        %318 = vmatprep.subr.mxu0 0.0
        %319 = vmatpush1.msra.mxu0 0.0
        %320 = vmatprep.subr.mxu0 0.0
        %321 = vmatpush1.msra.mxu0 0.0
        %322 = vmatprep.subr.mxu0 0.0
        %323 = vmatpush1.msra.mxu0 0.0
        %324 = vmatprep.subr.mxu0 0.0
        %325 = vmatpush1.msra.mxu0 0.0
        %326 = vmatprep.subr.mxu0 0.0
        %327 = vmatpush1.msra.mxu0 0.0
        %328 = vmatprep.subr.mxu0 0.0
        %329 = vmatpush1.msra.mxu0 0.0
        %330 = vmatprep.subr.mxu0 0.0
        %331 = vmatpush1.msra.mxu0 0.0
        %332 = vmatprep.subr.mxu0 0.0
        %333 = vmatpush1.msra.mxu0 0.0
        %334 = vmatprep.subr.mxu0 0.0
        %335 = vmatpush1.msra.mxu0 0.0
        %336 = vmatprep.subr.mxu0 0.0
        %337 = vmatpush1.msra.mxu0 0.0
        %338 = vmatprep.subr.mxu0 0.0
        %339 = vmatpush1.msra.mxu0 0.0
        %340 = vmatprep.subr.mxu0 0.0
        %341 = vmatpush1.msra.mxu0 0.0
        %342 = vmatprep.subr.mxu0 0.0
        %343 = vmatpush1.msra.mxu0 0.0
        %344 = vmatprep.subr.mxu0 0.0
        %345 = vmatpush1.msra.mxu0 0.0
        %346 = vmatprep.subr.mxu0 0.0
        %347 = vmatpush1.msra.mxu0 0.0
        %348 = vmatprep.subr.mxu0 0.0
        %349 = vmatpush1.msra.mxu0 0.0
        %350 = vmatprep.subr.mxu0 0.0
        %351 = vmatpush1.msra.mxu0 0.0
        %352 = vmatprep.subr.mxu0 0.0
        %353 = vmatpush1.msra.mxu0 0.0
        %354 = vmatprep.subr.mxu0 0.0
        %355 = vmatpush1.msra.mxu0 0.0
        %356 = vmatprep.mubr.f32.mxu0 0.0
        %357 = vmatmul.mubr.f32.gmra.mrb[0].mxu0 %v269
        %v358 = vpop.f32.mrb[0].mxu0
        %v359 = vadd.f32 %v265, %v358
        %v360 = vpop.f32.mrb[0].mxu0
        %361 = vmatprep.mubr.f32.mxu0 0.0
        %362 = vmatmul.mubr.f32.gmra.mrb[0].mxu0 %v272
        %v363 = vpop.f32.mrb[0].mxu0
        %v364 = vadd.f32 %v265, %v363
        %v365 = vpop.f32.mrb[0].mxu0
        %366 = vmatprep.mubr.f32.mxu0 0.0
        %367 = vmatmul.mubr.f32.gmra.mrb[0].mxu0 %v275
        %v368 = vpop.f32.mrb[0].mxu0
        %v369 = vadd.f32 %v265, %v368
        %v370 = vpop.f32.mrb[0].mxu0
        %371 = vmatprep.mubr.f32.mxu0 0.0
        %372 = vmatmul.mubr.f32.gmra.mrb[0].mxu0 %v278
        %v373 = vpop.f32.mrb[0].mxu0
        %v374 = vadd.f32 %v265, %v373
        %v375 = vpop.f32.mrb[0].mxu0
        %376 = vmatprep.mubr.f32.mxu0 0.0
        %377 = vmatmul.mubr.f32.gmra.mrb[0].mxu0 %v281
        %v378 = vpop.f32.mrb[0].mxu0
        %v379 = vadd.f32 %v265, %v378
        %v380 = vpop.f32.mrb[0].mxu0
        %381 = vmatprep.mubr.f32.mxu0 0.0
        %382 = vmatmul.mubr.f32.gmra.mrb[0].mxu0 %v284
        %v383 = vpop.f32.mrb[0].mxu0
        %v384 = vadd.f32 %v265, %v383
        %v385 = vpop.f32.mrb[0].mxu0
        %386 = vmatprep.mubr.f32.mxu0 0.0
        %387 = vmatmul.mubr.f32.gmra.mrb[0].mxu0 %v287
        %v388 = vpop.f32.mrb[0].mxu0
        %v389 = vadd.f32 %v265, %v388
        %v390 = vpop.f32.mrb[0].mxu0
        %391 = vmatprep.mubr.f32.mxu0 0.0
        %392 = vmatmul.mubr.f32.gmra.mrb[0].mxu0 %v290
        %v393 = vpop.f32.mrb[0].mxu0
        %v394 = vadd.f32 %v265, %v393
        %v395 = vpop.f32.mrb[0].mxu0
        %396 = vdwg.mxu0
        %v397 = vld [vmem:[#allocation7] sm:$0xff]
        %v398 = vld [vmem:[#allocation7 + $0x8] sm:$0xff]
        %vm399 = vcmask 130048
        %v401 = vsel %vm399, %v397, 0
        %v404 = vsel %vm399, %v398, 0
        %406 = vmatprep.subr.mxu0 0.0
        %407 = vmatpush1.msra.mxu0 %v359
        %408 = vmatprep.subr.mxu0 0.0
        %409 = vmatpush1.msra.mxu0 %v364
        %410 = vmatprep.subr.mxu0 0.0
        %411 = vmatpush1.msra.mxu0 0.0
        %412 = vmatprep.subr.mxu0 0.0
        %413 = vmatpush1.msra.mxu0 0.0
        %414 = vmatprep.subr.mxu0 0.0
        %415 = vmatpush1.msra.mxu0 0.0
        %416 = vmatprep.subr.mxu0 0.0
        %417 = vmatpush1.msra.mxu0 0.0
        %418 = vmatprep.subr.mxu0 0.0
        %419 = vmatpush1.msra.mxu0 0.0
        %420 = vmatprep.subr.mxu0 0.0
        %421 = vmatpush1.msra.mxu0 0.0
        %422 = vmatprep.subr.mxu0 0.0
        %423 = vmatpush1.msra.mxu0 0.0
        %424 = vmatprep.subr.mxu0 0.0
        %425 = vmatpush1.msra.mxu0 0.0
        %426 = vmatprep.subr.mxu0 0.0
        %427 = vmatpush1.msra.mxu0 0.0
        %428 = vmatprep.subr.mxu0 0.0
        %429 = vmatpush1.msra.mxu0 0.0
        %430 = vmatprep.subr.mxu0 0.0
        %431 = vmatpush1.msra.mxu0 0.0
        %432 = vmatprep.subr.mxu0 0.0
        %433 = vmatpush1.msra.mxu0 0.0
        %434 = vmatprep.subr.mxu0 0.0
        %435 = vmatpush1.msra.mxu0 0.0
        %436 = vmatprep.subr.mxu0 0.0
        %437 = vmatpush1.msra.mxu0 0.0
        %438 = vmatprep.subr.mxu0 0.0
        %439 = vmatpush1.msra.mxu0 0.0
        %440 = vmatprep.subr.mxu0 0.0
        %441 = vmatpush1.msra.mxu0 0.0
        %442 = vmatprep.subr.mxu0 0.0
        %443 = vmatpush1.msra.mxu0 0.0
        %444 = vmatprep.subr.mxu0 0.0
        %445 = vmatpush1.msra.mxu0 0.0
        %446 = vmatprep.subr.mxu0 0.0
        %447 = vmatpush1.msra.mxu0 0.0
        %448 = vmatprep.subr.mxu0 0.0
        %449 = vmatpush1.msra.mxu0 0.0
        %450 = vmatprep.subr.mxu0 0.0
        %451 = vmatpush1.msra.mxu0 0.0
        %452 = vmatprep.subr.mxu0 0.0
        %453 = vmatpush1.msra.mxu0 0.0
        %454 = vmatprep.subr.mxu0 0.0
        %455 = vmatpush1.msra.mxu0 0.0
        %456 = vmatprep.subr.mxu0 0.0
        %457 = vmatpush1.msra.mxu0 0.0
        %458 = vmatprep.subr.mxu0 0.0
        %459 = vmatpush1.msra.mxu0 0.0
        %460 = vmatprep.subr.mxu0 0.0
        %461 = vmatpush1.msra.mxu0 0.0
        %462 = vmatprep.subr.mxu0 0.0
        %463 = vmatpush1.msra.mxu0 0.0
        %464 = vmatprep.subr.mxu0 0.0
        %465 = vmatpush1.msra.mxu0 0.0
        %466 = vmatprep.subr.mxu0 0.0
        %467 = vmatpush1.msra.mxu0 0.0
        %468 = vmatprep.subr.mxu0 0.0
        %469 = vmatpush1.msra.mxu0 0.0
        %470 = vmatprep.mubr.f32.mxu0 0.0
        %471 = vmatmul.mubr.f32.gmra.mrb[0].mxu0 %v401
        %v472 = vpop.f32.mrb[0].mxu0
        %v473 = vadd.f32 0.0, %v472
        %v474 = vpop.f32.mrb[0].mxu0
        %475 = vmatprep.mubr.f32.mxu0 0.0
        %476 = vmatmul.mubr.f32.gmra.mrb[0].mxu0 %v404
        %v477 = vpop.f32.mrb[0].mxu0
        %v478 = vadd.f32 0.0, %v477
        %v479 = vpop.f32.mrb[0].mxu0
        %480 = vdwg.mxu0
        %v481 = vmax.f32 %v473, 0.0
        %v482 = vmax.f32 %v478, 0.0
        %483 = vst [vmem:[%s245] sm:$0xff] %v481
        %484 = vst [vmem:[%s245 + $0x8] sm:$0xff] %v482
        %485 = vmatprep.subr.mxu0 0.0
        %486 = vmatpush1.msra.mxu0 %v369
        %487 = vmatprep.subr.mxu0 0.0
        %488 = vmatpush1.msra.mxu0 %v374
        %489 = vmatprep.subr.mxu0 0.0
        %490 = vmatpush1.msra.mxu0 0.0
        %491 = vmatprep.subr.mxu0 0.0
        %492 = vmatpush1.msra.mxu0 0.0
        %493 = vmatprep.subr.mxu0 0.0
        %494 = vmatpush1.msra.mxu0 0.0
        %495 = vmatprep.subr.mxu0 0.0
        %496 = vmatpush1.msra.mxu0 0.0
        %497 = vmatprep.subr.mxu0 0.0
        %498 = vmatpush1.msra.mxu0 0.0
        %499 = vmatprep.subr.mxu0 0.0
        %500 = vmatpush1.msra.mxu0 0.0
        %501 = vmatprep.subr.mxu0 0.0
        %502 = vmatpush1.msra.mxu0 0.0
        %503 = vmatprep.subr.mxu0 0.0
        %504 = vmatpush1.msra.mxu0 0.0
        %505 = vmatprep.subr.mxu0 0.0
        %506 = vmatpush1.msra.mxu0 0.0
        %507 = vmatprep.subr.mxu0 0.0
        %508 = vmatpush1.msra.mxu0 0.0
        %509 = vmatprep.subr.mxu0 0.0
        %510 = vmatpush1.msra.mxu0 0.0
        %511 = vmatprep.subr.mxu0 0.0
        %512 = vmatpush1.msra.mxu0 0.0
        %513 = vmatprep.subr.mxu0 0.0
        %514 = vmatpush1.msra.mxu0 0.0
        %515 = vmatprep.subr.mxu0 0.0
        %516 = vmatpush1.msra.mxu0 0.0
        %517 = vmatprep.subr.mxu0 0.0
        %518 = vmatpush1.msra.mxu0 0.0
        %519 = vmatprep.subr.mxu0 0.0
        %520 = vmatpush1.msra.mxu0 0.0
        %521 = vmatprep.subr.mxu0 0.0
        %522 = vmatpush1.msra.mxu0 0.0
        %523 = vmatprep.subr.mxu0 0.0
        %524 = vmatpush1.msra.mxu0 0.0
        %525 = vmatprep.subr.mxu0 0.0
        %526 = vmatpush1.msra.mxu0 0.0
        %527 = vmatprep.subr.mxu0 0.0
        %528 = vmatpush1.msra.mxu0 0.0
        %529 = vmatprep.subr.mxu0 0.0
        %530 = vmatpush1.msra.mxu0 0.0
        %531 = vmatprep.subr.mxu0 0.0
        %532 = vmatpush1.msra.mxu0 0.0
        %533 = vmatprep.subr.mxu0 0.0
        %534 = vmatpush1.msra.mxu0 0.0
        %535 = vmatprep.subr.mxu0 0.0
        %536 = vmatpush1.msra.mxu0 0.0
        %537 = vmatprep.subr.mxu0 0.0
        %538 = vmatpush1.msra.mxu0 0.0
        %539 = vmatprep.subr.mxu0 0.0
        %540 = vmatpush1.msra.mxu0 0.0
        %541 = vmatprep.subr.mxu0 0.0
        %542 = vmatpush1.msra.mxu0 0.0
        %543 = vmatprep.subr.mxu0 0.0
        %544 = vmatpush1.msra.mxu0 0.0
        %545 = vmatprep.subr.mxu0 0.0
        %546 = vmatpush1.msra.mxu0 0.0
        %547 = vmatprep.subr.mxu0 0.0
        %548 = vmatpush1.msra.mxu0 0.0
        %549 = vmatprep.mubr.f32.mxu0 0.0
        %550 = vmatmul.mubr.f32.gmra.mrb[0].mxu0 %v401
        %v551 = vpop.f32.mrb[0].mxu0
        %v552 = vadd.f32 0.0, %v551
        %v553 = vpop.f32.mrb[0].mxu0
        %554 = vmatprep.mubr.f32.mxu0 0.0
        %555 = vmatmul.mubr.f32.gmra.mrb[0].mxu0 %v404
        %v556 = vpop.f32.mrb[0].mxu0
        %v557 = vadd.f32 0.0, %v556
        %v558 = vpop.f32.mrb[0].mxu0
        %559 = vdwg.mxu0
        %v560 = vmax.f32 %v552, 0.0
        %v561 = vmax.f32 %v557, 0.0
        %s562 = scalar_lea.vmem %s245, 16 [#allocation8]
        %563 = vst [vmem:[%s562] sm:$0xff] %v560
        %564 = vst [vmem:[%s562 + $0x8] sm:$0xff] %v561
        %565 = vmatprep.subr.mxu0 0.0
        %566 = vmatpush1.msra.mxu0 %v379
        %567 = vmatprep.subr.mxu0 0.0
        %568 = vmatpush1.msra.mxu0 %v384
        %569 = vmatprep.subr.mxu0 0.0
        %570 = vmatpush1.msra.mxu0 0.0
        %571 = vmatprep.subr.mxu0 0.0
        %572 = vmatpush1.msra.mxu0 0.0
        %573 = vmatprep.subr.mxu0 0.0
        %574 = vmatpush1.msra.mxu0 0.0
        %575 = vmatprep.subr.mxu0 0.0
        %576 = vmatpush1.msra.mxu0 0.0
        %577 = vmatprep.subr.mxu0 0.0
        %578 = vmatpush1.msra.mxu0 0.0
        %579 = vmatprep.subr.mxu0 0.0
        %580 = vmatpush1.msra.mxu0 0.0
        %581 = vmatprep.subr.mxu0 0.0
        %582 = vmatpush1.msra.mxu0 0.0
        %583 = vmatprep.subr.mxu0 0.0
        %584 = vmatpush1.msra.mxu0 0.0
        %585 = vmatprep.subr.mxu0 0.0
        %586 = vmatpush1.msra.mxu0 0.0
        %587 = vmatprep.subr.mxu0 0.0
        %588 = vmatpush1.msra.mxu0 0.0
        %589 = vmatprep.subr.mxu0 0.0
        %590 = vmatpush1.msra.mxu0 0.0
        %591 = vmatprep.subr.mxu0 0.0
        %592 = vmatpush1.msra.mxu0 0.0
        %593 = vmatprep.subr.mxu0 0.0
        %594 = vmatpush1.msra.mxu0 0.0
        %595 = vmatprep.subr.mxu0 0.0
        %596 = vmatpush1.msra.mxu0 0.0
        %597 = vmatprep.subr.mxu0 0.0
        %598 = vmatpush1.msra.mxu0 0.0
        %599 = vmatprep.subr.mxu0 0.0
        %600 = vmatpush1.msra.mxu0 0.0
        %601 = vmatprep.subr.mxu0 0.0
        %602 = vmatpush1.msra.mxu0 0.0
        %603 = vmatprep.subr.mxu0 0.0
        %604 = vmatpush1.msra.mxu0 0.0
        %605 = vmatprep.subr.mxu0 0.0
        %606 = vmatpush1.msra.mxu0 0.0
        %607 = vmatprep.subr.mxu0 0.0
        %608 = vmatpush1.msra.mxu0 0.0
        %609 = vmatprep.subr.mxu0 0.0
        %610 = vmatpush1.msra.mxu0 0.0
        %611 = vmatprep.subr.mxu0 0.0
        %612 = vmatpush1.msra.mxu0 0.0
        %613 = vmatprep.subr.mxu0 0.0
        %614 = vmatpush1.msra.mxu0 0.0
        %615 = vmatprep.subr.mxu0 0.0
        %616 = vmatpush1.msra.mxu0 0.0
        %617 = vmatprep.subr.mxu0 0.0
        %618 = vmatpush1.msra.mxu0 0.0
        %619 = vmatprep.subr.mxu0 0.0
        %620 = vmatpush1.msra.mxu0 0.0
        %621 = vmatprep.subr.mxu0 0.0
        %622 = vmatpush1.msra.mxu0 0.0
        %623 = vmatprep.subr.mxu0 0.0
        %624 = vmatpush1.msra.mxu0 0.0
        %625 = vmatprep.subr.mxu0 0.0
        %626 = vmatpush1.msra.mxu0 0.0
        %627 = vmatprep.subr.mxu0 0.0
        %628 = vmatpush1.msra.mxu0 0.0
        %629 = vmatprep.mubr.f32.mxu0 0.0
        %630 = vmatmul.mubr.f32.gmra.mrb[0].mxu0 %v401
        %v631 = vpop.f32.mrb[0].mxu0
        %v632 = vadd.f32 0.0, %v631
        %v633 = vpop.f32.mrb[0].mxu0
        %634 = vmatprep.mubr.f32.mxu0 0.0
        %635 = vmatmul.mubr.f32.gmra.mrb[0].mxu0 %v404
        %v636 = vpop.f32.mrb[0].mxu0
        %v637 = vadd.f32 0.0, %v636
        %v638 = vpop.f32.mrb[0].mxu0
        %639 = vdwg.mxu0
        %v640 = vmax.f32 %v632, 0.0
        %v641 = vmax.f32 %v637, 0.0
        %s642 = scalar_lea.vmem %s245, 32 [#allocation8]
        %643 = vst [vmem:[%s642] sm:$0xff] %v640
        %644 = vst [vmem:[%s642 + $0x8] sm:$0xff] %v641
        %645 = vmatprep.subr.mxu0 0.0
        %646 = vmatpush1.msra.mxu0 %v389
        %647 = vmatprep.subr.mxu0 0.0
        %648 = vmatpush1.msra.mxu0 %v394
        %649 = vmatprep.subr.mxu0 0.0
        %650 = vmatpush1.msra.mxu0 0.0
        %651 = vmatprep.subr.mxu0 0.0
        %652 = vmatpush1.msra.mxu0 0.0
        %653 = vmatprep.subr.mxu0 0.0
        %654 = vmatpush1.msra.mxu0 0.0
        %655 = vmatprep.subr.mxu0 0.0
        %656 = vmatpush1.msra.mxu0 0.0
        %657 = vmatprep.subr.mxu0 0.0
        %658 = vmatpush1.msra.mxu0 0.0
        %659 = vmatprep.subr.mxu0 0.0
        %660 = vmatpush1.msra.mxu0 0.0
        %661 = vmatprep.subr.mxu0 0.0
        %662 = vmatpush1.msra.mxu0 0.0
        %663 = vmatprep.subr.mxu0 0.0
        %664 = vmatpush1.msra.mxu0 0.0
        %665 = vmatprep.subr.mxu0 0.0
        %666 = vmatpush1.msra.mxu0 0.0
        %667 = vmatprep.subr.mxu0 0.0
        %668 = vmatpush1.msra.mxu0 0.0
        %669 = vmatprep.subr.mxu0 0.0
        %670 = vmatpush1.msra.mxu0 0.0
        %671 = vmatprep.subr.mxu0 0.0
        %672 = vmatpush1.msra.mxu0 0.0
        %673 = vmatprep.subr.mxu0 0.0
        %674 = vmatpush1.msra.mxu0 0.0
        %675 = vmatprep.subr.mxu0 0.0
        %676 = vmatpush1.msra.mxu0 0.0
        %677 = vmatprep.subr.mxu0 0.0
        %678 = vmatpush1.msra.mxu0 0.0
        %679 = vmatprep.subr.mxu0 0.0
        %680 = vmatpush1.msra.mxu0 0.0
        %681 = vmatprep.subr.mxu0 0.0
        %682 = vmatpush1.msra.mxu0 0.0
        %683 = vmatprep.subr.mxu0 0.0
        %684 = vmatpush1.msra.mxu0 0.0
        %685 = vmatprep.subr.mxu0 0.0
        %686 = vmatpush1.msra.mxu0 0.0
        %687 = vmatprep.subr.mxu0 0.0
        %688 = vmatpush1.msra.mxu0 0.0
        %689 = vmatprep.subr.mxu0 0.0
        %690 = vmatpush1.msra.mxu0 0.0
        %691 = vmatprep.subr.mxu0 0.0
        %692 = vmatpush1.msra.mxu0 0.0
        %693 = vmatprep.subr.mxu0 0.0
        %694 = vmatpush1.msra.mxu0 0.0
        %695 = vmatprep.subr.mxu0 0.0
        %696 = vmatpush1.msra.mxu0 0.0
        %697 = vmatprep.subr.mxu0 0.0
        %698 = vmatpush1.msra.mxu0 0.0
        %699 = vmatprep.subr.mxu0 0.0
        %700 = vmatpush1.msra.mxu0 0.0
        %701 = vmatprep.subr.mxu0 0.0
        %702 = vmatpush1.msra.mxu0 0.0
        %703 = vmatprep.subr.mxu0 0.0
        %704 = vmatpush1.msra.mxu0 0.0
        %705 = vmatprep.subr.mxu0 0.0
        %706 = vmatpush1.msra.mxu0 0.0
        %707 = vmatprep.subr.mxu0 0.0
        %708 = vmatpush1.msra.mxu0 0.0
        %709 = vmatprep.mubr.f32.mxu0 0.0
        %710 = vmatmul.mubr.f32.gmra.mrb[0].mxu0 %v401
        %v711 = vpop.f32.mrb[0].mxu0
        %v712 = vadd.f32 0.0, %v711
        %v713 = vpop.f32.mrb[0].mxu0
        %714 = vmatprep.mubr.f32.mxu0 0.0
        %715 = vmatmul.mubr.f32.gmra.mrb[0].mxu0 %v404
        %v716 = vpop.f32.mrb[0].mxu0
        %v717 = vadd.f32 0.0, %v716
        %v718 = vpop.f32.mrb[0].mxu0
        %719 = vdwg.mxu0
        %v720 = vmax.f32 %v712, 0.0
        %v721 = vmax.f32 %v717, 0.0
        %s722 = scalar_lea.vmem %s245, 48 [#allocation8]
        %723 = vst [vmem:[%s722] sm:$0xff] %v720
        %724 = vst [vmem:[%s722 + $0x8] sm:$0xff] %v721
        %s725 = sand.u32 %s119, 1
        %s726 = scalar_lea.sflag [#allocation4], %s725
        %s727 = sand.u32 %s119, 1
        %s728 = smul.addr %s727, 64
        %s729 = scalar_lea.vmem [#allocation8], %s728
        // Predicated region
        $region49: #{tpu_custom_call.1} parent=35 // pred_check
          %p730 = pneg %p129
        $region50: #{tpu_custom_call.1} parent=35 // pred_check_branch
          %732 = sbr.rel (%p730) target = $region52
        $region51: #{tpu_custom_call.1} parent=35 // pred_region
          %s733 = smul.u32 4, %s22
          %s735 = ssub.s32 1024, 1024
          %736 = vsyncadd %s726, %s735
          %s737 = smul.addr %s733, 2
          %s738 = smul.addr %s737, 128
          %s739 = scalar_lea.hbm %s4, %s738
          %s740 = sshll.u32 %s729, 4
          %s741 = int_to_ptr.vmem [resolvable:$true] %s740
          %746 = dma.vmem_to_hbm [thread:$0]  %s741, 1024, %s739, %s726, 128, 128, 8
        $region52: #{tpu_custom_call.1} parent=35 // pred_fallthru
          _
      $region36: #{tpu_custom_call.1} parent=5 // pred_fallthru
        _
      %p747 = scmp.le.s32.totalorder 2, %s17
      // Predicated region
      $region53: #{tpu_custom_call.1} parent=5 // pred_check
        %p748 = pneg %p747
      $region54: #{tpu_custom_call.1} parent=5 // pred_check_branch
        %750 = sbr.rel (%p748) target = $region56
      $region55: #{tpu_custom_call.1} parent=5 // pred_region
        %s751 = ssub.s32 %s17, 2
        // Predicated region
        $region57: #{tpu_custom_call.1} parent=55 // pred_check
          %p752 = pneg %p135
        $region58: #{tpu_custom_call.1} parent=55 // pred_check_branch
          %754 = sbr.rel (%p752) target = $region60
        $region59: #{tpu_custom_call.1} parent=55 // pred_region
          %s755 = sand.u32 %s120, 1
          %s756 = scalar_lea.sflag [#allocation4], %s755
          %s757 = sand.u32 %s120, 1
          %s758 = smul.addr %s757, 64
          %s759 = scalar_lea.vmem [#allocation8], %s758
          %760 = dma.done %s756, 1024
        $region60: #{tpu_custom_call.1} parent=55 // pred_fallthru
          _
      $region56: #{tpu_custom_call.1} parent=5 // pred_fallthru
        _
    $region6: #{tpu_custom_call.1} parent=1 // loop_footer
      %s21 = sadd.s32 1, %s17
    $region7: #{tpu_custom_call.1} parent=1 // loop_footer_branch
      %16 = sbr.rel target = $region3
    $region8: #{tpu_custom_call.1} parent=1 // loop_exit
      _
    %761 = vsyncpa [#allocation3], 1
    %s762 = scalar_lea.sflag [#allocation3], 1
    %763 = vsyncpa %s762, 1
    %764 = vsyncpa [#allocation6], 1
    %765 = vsyncpa [#allocation4], 1
    %s766 = scalar_lea.sflag [#allocation4], 1
    %767 = vsyncpa %s766, 1

</llo_original>
